<compile_context>
chip_gen: v7x
topology: tpu7x:2x2x1
jax: 0.10.0
libtpu: 0.0.40
codegen_flags: <defaults>
</compile_context>

<pallas_src>
import functools
import math

import jax
import jax.numpy as jnp
from jax import lax
from jax.experimental import pallas as pl
from jax.experimental.pallas import tpu as pltpu

LANE = 128
SUBLANE = 8
_LOG_2PI = math.log(2.0 * math.pi)


def _cdiv(a, b):
    return -(-a // b)


def _round_up(x, m):
    return _cdiv(x, m) * m


def _round_down(x, m):
    return (x // m) * m


def _device_kind():
    try:
        return jax.devices()[0].device_kind.lower()
    except Exception:
        return ""


def _num_tensorcores(kind):
    # Chips where one Pallas program spans >1 TensorCore (megacore / dual-TC).
    if "lite" in kind:
        return 1
    if any(tag in kind for tag in ("v4", "v5p", "v7")):
        return 2
    return 1


def _default_tile_rows(kind):
    # Per-input block bytes (f32): 8192 rows -> 4 MiB, 4096 -> 2 MiB, 2048 -> 1 MiB.
    if "v7" in kind:
        return 8192
    if "v6" in kind:
        return 4096
    return 2048


def _lane_view(x, min_rows):
    """Flatten x into a lane-dense (rows, 128) view with minimal zero padding.

    Zero fill contributes exactly 0 to both the Poisson NLL (pred=tgt=0) and
    the MSE, and the means divide by the ORIGINAL element counts, so results
    are unchanged.  No pad (hence no copy) when size is already 128-aligned.
    """
    flat = x.reshape(-1)
    n = flat.shape[0]
    target = max(_round_up(n, LANE), min_rows * LANE)
    if target != n:
        flat = jnp.pad(flat, (0, target - n))
    return flat.reshape(-1, LANE)


def _combined_loss_kernel(pn_ref, tn_ref, pb_ref, tb_ref, out_ref, acc_ref, *,
                          tm, tiles_per_split, valid_rows, need_mask,
                          neural_scale, behavior_scale):
    c = pl.program_id(0)   # TensorCore split ("parallel")
    i = pl.program_id(1)   # row-tile reduction axis ("arbitrary")

    @pl.when(i == 0)
    def _init():
        acc_ref[...] = jnp.zeros_like(acc_ref)

    eps = jnp.float32(1e-8)
    pred = pn_ref[...].astype(jnp.float32)
    tgt = tn_ref[...].astype(jnp.float32)

    # ---- Poisson NLL (log_input=False, full=True) for this tile ----
    loss = pred - tgt * jnp.log(pred + eps)
    gt1 = tgt > 1.0
    safe_t = jnp.where(gt1, tgt, 1.0)            # keeps log finite in masked lanes
    log_t = jnp.log(safe_t)                      # single transcendental, reused
    stirling = (safe_t + 0.5) * log_t - safe_t + jnp.float32(0.5 * _LOG_2PI)
    loss = jnp.where(gt1, loss + stirling, loss)

    if need_mask:
        # Select-mask rows beyond the real data (partial last block / clamped
        # duplicate tile).  Must be a select, not a multiply, so NaN/Inf from
        # garbage VMEM never propagates.
        limit = valid_rows - (c * tiles_per_split + i) * tm
        row = lax.broadcasted_iota(jnp.int32, (tm, LANE), 0)
        loss = jnp.where(row < limit, loss, jnp.float32(0.0))

    # Single-vreg accumulator: (tm//8, 8, 128) sum over axis 0 lowers to a tree
    # of pure VPU vreg adds (splits exactly on (8,128) vreg boundaries).
    acc_ref[...] += loss.reshape(tm // SUBLANE, SUBLANE, LANE).sum(axis=0)

    # ---- finalize: one cross-lane reduce + resident behavior-MSE term ----
    @pl.when(i == pl.num_programs(1) - 1)
    def _finalize():
        total = jnp.float32(neural_scale) * jnp.sum(acc_ref[...])
        d = pb_ref[...].astype(jnp.float32) - tb_ref[...].astype(jnp.float32)
        beh = jnp.float32(behavior_scale) * jnp.sum(d * d)
        # Behavior term is counted exactly once (split 0 only).
        total = total + jnp.where(c == 0, beh, jnp.float32(0.0))
        out_ref[...] = jnp.broadcast_to(total, out_ref.shape)


def combined_loss(predictions, targets, neural_weight=1.0, behavior_weight=1.0,
                  *, tile_rows=None, num_splits=None):
    pn = predictions["pred_neural"]
    tn = targets["neural_input"]
    pb = predictions["pred_behavior"]
    tb = targets["behavior_input"]

    n_neural = int(pn.size)
    n_behavior = int(pb.size)

    kind = _device_kind()
    if tile_rows is None:
        tile_rows = _default_tile_rows(kind)
    if num_splits is None:
        num_splits = _num_tensorcores(kind)

    # Sublane tile for the streamed dtype: f32 -> 8, bf16 -> 16, int8 -> 32.
    itemsize = min(pn.dtype.itemsize, tn.dtype.itemsize)
    sub = SUBLANE * max(1, 4 // max(1, itemsize))

    # --- neural stream: lane-dense (rows, 128), minimal padding, row-tiled ---
    pn2 = _lane_view(pn, sub)
    tn2 = _lane_view(tn, sub)
    rows = pn2.shape[0]

    tm = max(sub, min(_round_up(int(tile_rows), sub), _round_down(rows, sub)))
    n_tiles = _cdiv(rows, tm)

    n_split = num_splits if n_tiles >= 2 * num_splits else 1
    tiles_per_split = _cdiv(n_tiles, n_split)
    total_tiles = n_split * tiles_per_split
    need_mask = total_tiles * tm > rows

    if total_tiles > n_tiles:
        # Duplicate tile for an odd split: clamp the DMA to a real block; the
        # in-kernel mask zeroes its contribution (its logical rows >= rows).
        last_blk = n_tiles - 1
        neural_map = lambda c, i: (jnp.minimum(c * tiles_per_split + i, last_blk), 0)
    else:
        neural_map = lambda c, i: (c * tiles_per_split + i, 0)

    # --- behavior stream: lane-dense, DMA'd once (constant index map), resident ---
    pb2 = _lane_view(pb, 1)
    tb2 = _lane_view(tb, 1)
    rows_b = pb2.shape[0]
    resident_map = lambda c, i: (0, 0)

    kernel = functools.partial(
        _combined_loss_kernel,
        tm=tm,
        tiles_per_split=tiles_per_split,
        valid_rows=rows,
        need_mask=need_mask,
        neural_scale=float(neural_weight) / float(n_neural),
        behavior_scale=float(behavior_weight) / float(n_behavior),
    )

    out = pl.pallas_call(
        kernel,
        out_shape=jax.ShapeDtypeStruct((1, n_split * LANE), jnp.float32),
        grid_spec=pltpu.PrefetchScalarGridSpec(
            num_scalar_prefetch=0,
            grid=(n_split, tiles_per_split),
            in_specs=[
                pl.BlockSpec((tm, LANE), neural_map),
                pl.BlockSpec((tm, LANE), neural_map),
                pl.BlockSpec((rows_b, LANE), resident_map),
                pl.BlockSpec((rows_b, LANE), resident_map),
            ],
            out_specs=pl.BlockSpec((1, LANE), lambda c, i: (0, c)),
            scratch_shapes=[pltpu.VMEM((SUBLANE, LANE), jnp.float32)],
        ),
        compiler_params=pltpu.CompilerParams(
            dimension_semantics=("parallel", "arbitrary"),
            vmem_limit_bytes=32 * 1024 * 1024,
        ),
    )(pn2, tn2, pb2, tb2)

    # One scalar per split lives in lane 0 of each 128-wide output block.
    return jnp.sum(out.reshape(n_split, LANE)[:, 0])


def _reference_combined_loss(predictions, targets, neural_weight=1.0, behavior_weight=1.0):
    """Pure-JAX reference mirroring torch.nn.functional semantics."""
    pred_n = predictions["pred_neural"].astype(jnp.float32)
    tgt_n = targets["neural_input"].astype(jnp.float32)
    eps = 1e-8
    loss = pred_n - tgt_n * jnp.log(pred_n + eps)
    safe_t = jnp.where(tgt_n > 1.0, tgt_n, 1.0)
    stirling = safe_t * jnp.log(safe_t) - safe_t + 0.5 * jnp.log(2.0 * jnp.pi * safe_t)
    loss = loss + jnp.where(tgt_n > 1.0, stirling, 0.0)
    loss_neural = jnp.mean(loss)

    pred_b = predictions["pred_behavior"].astype(jnp.float32)
    tgt_b = targets["behavior_input"].astype(jnp.float32)
    loss_behavior = jnp.mean((pred_b - tgt_b) ** 2)

    return neural_weight * loss_neural + behavior_weight * loss_behavior


def _make_case(key, B, T, N, D):
    k1, k2, k3, k4 = jax.random.split(key, 4)
    # Predicted firing rates must be positive (log_input=False).
    pred_neural = jax.random.uniform(k1, (B, T, N), jnp.float32, minval=0.1, maxval=3.0)
    # Spike-count-like targets (includes values > 1 to exercise the Stirling term).
    neural_input = jnp.floor(jax.random.uniform(k2, (B, T, N), jnp.float32,
                                                minval=0.0, maxval=4.0))
    pred_behavior = jax.random.normal(k3, (B, T, D), jnp.float32)
    behavior_input = jax.random.normal(k4, (B, T, D), jnp.float32)
    predictions = {"pred_neural": pred_neural, "pred_behavior": pred_behavior}
    targets = {"neural_input": neural_input, "behavior_input": behavior_input}
    return predictions, targets


if __name__ == "__main__":
    key = jax.random.PRNGKey(0)
    k_case1, k_case2 = jax.random.split(key)

    # Case 1: small shapes from the module spec (single block, no masking needed).
    preds1, tgts1 = _make_case(k_case1, B=2, T=8, N=32, D=4)
    out1 = jax.block_until_ready(combined_loss(preds1, tgts1, 1.0, 1.0))
    ref1 = _reference_combined_loss(preds1, tgts1, 1.0, 1.0)
    assert jnp.allclose(out1, ref1, rtol=1e-4, atol=1e-4), (out1, ref1)

    # Case 2: odd shapes (128-ragged element count -> minimal tail pad, partial
    # last block + in-kernel mask), auto tile size / TC-aware split, weights.
    preds2, tgts2 = _make_case(k_case2, B=4, T=300, N=130, D=7)
    out2 = jax.block_until_ready(combined_loss(preds2, tgts2, 1.0, 0.5))
    ref2 = _reference_combined_loss(preds2, tgts2, 1.0, 0.5)
    assert jnp.allclose(out2, ref2, rtol=1e-4, atol=1e-4), (out2, ref2)

    # Case 3: same data, forced small tiles + 2-way split to exercise multi-tile
    # accumulation, the clamped duplicate tile and tail masking on any chip.
    out3 = jax.block_until_ready(
        combined_loss(preds2, tgts2, 1.0, 0.5, tile_rows=96, num_splits=2))
    assert jnp.allclose(out3, ref2, rtol=1e-4, atol=1e-4), (out3, ref2)

    print("KERNEL_OK")
</pallas_src>

<mosaic_0001>
module attributes {stable_mosaic.version = 11 : i64} {
  func.func @_combined_loss_kernel(%arg0: i32, %arg1: i32, %arg2: memref<8x128xf32, #tpu.memory_space<vmem>>, %arg3: memref<8x128xf32, #tpu.memory_space<vmem>>, %arg4: memref<1x128xf32, #tpu.memory_space<vmem>>, %arg5: memref<1x128xf32, #tpu.memory_space<vmem>>, %arg6: memref<1x128xf32, #tpu.memory_space<vmem>>, %arg7: memref<8x128xf32, #tpu.memory_space<vmem>>) attributes {dimension_semantics = [#tpu.dimension_semantics<parallel>, #tpu.dimension_semantics<arbitrary>], iteration_bounds = array<i64: 1, 1>, scalar_prefetch = 0 : i64, scratch_operands = 1 : i64, tpu.core_type = #tpu.core_type<tc>, window_params = [{transform_indices = @transform_0, window_bounds = array<i64: 8, 128>}, {transform_indices = @transform_1, window_bounds = array<i64: 8, 128>}, {pipeline_mode = #tpu.pipeline_mode<synchronous>, transform_indices = @transform_2, window_bounds = array<i64: 1, 128>}, {pipeline_mode = #tpu.pipeline_mode<synchronous>, transform_indices = @transform_3, window_bounds = array<i64: 1, 128>}, {transform_indices = @transform_4, window_bounds = array<i64: 1, 128>}]} {
    %c0_i32 = arith.constant 0 : i32
    %0 = arith.cmpi eq, %arg1, %c0_i32 : i32
    %1 = arith.extui %0 : i1 to i32
    %c0_i32_0 = arith.constant 0 : i32
    %2 = arith.cmpi ne, %1, %c0_i32_0 : i32
    scf.if %2 {
      %cst_15 = arith.constant 0.000000e+00 : f32
      %31 = vector.broadcast %cst_15 : f32 to vector<8x128xf32>
      %c0_16 = arith.constant 0 : index
      %c0_17 = arith.constant 0 : index
      %32 = vector.load %arg7[%c0_16, %c0_17] : memref<8x128xf32, #tpu.memory_space<vmem>>, vector<8x128xf32>
      tpu.vector_store %arg7[%c0_16, %c0_17], %31 {strides = array<i32>} : memref<8x128xf32, #tpu.memory_space<vmem>>, vector<8x128xf32>,
    } else {
    }
    %c0 = arith.constant 0 : index
    %c0_1 = arith.constant 0 : index
    %3 = vector.load %arg2[%c0, %c0_1] : memref<8x128xf32, #tpu.memory_space<vmem>>, vector<8x128xf32>
    %c0_2 = arith.constant 0 : index
    %c0_3 = arith.constant 0 : index
    %4 = vector.load %arg3[%c0_2, %c0_3] : memref<8x128xf32, #tpu.memory_space<vmem>>, vector<8x128xf32>
    %cst = arith.constant 9.99999993E-9 : f32
    %5 = vector.broadcast %cst : f32 to vector<8x128xf32>
    %6 = arith.addf %3, %5 : vector<8x128xf32>
    %7 = math.log %6 : vector<8x128xf32>
    %8 = arith.mulf %4, %7 : vector<8x128xf32>
    %9 = arith.subf %3, %8 : vector<8x128xf32>
    %cst_4 = arith.constant 1.000000e+00 : f32
    %10 = vector.broadcast %cst_4 : f32 to vector<8x128xf32>
    %11 = arith.cmpf ogt, %4, %10 : vector<8x128xf32>
    %cst_5 = arith.constant 1.000000e+00 : f32
    %12 = vector.broadcast %cst_5 : f32 to vector<8x128xf32>
    %13 = arith.select %11, %4, %12 : vector<8x128xi1>, vector<8x128xf32>
    %14 = math.log %13 : vector<8x128xf32>
    %cst_6 = arith.constant 5.000000e-01 : f32
    %15 = vector.broadcast %cst_6 : f32 to vector<8x128xf32>
    %16 = arith.addf %13, %15 : vector<8x128xf32>
    %17 = arith.mulf %16, %14 : vector<8x128xf32>
    %18 = arith.subf %17, %13 : vector<8x128xf32>
    %cst_7 = arith.constant 0.918938517 : f32
    %19 = vector.broadcast %cst_7 : f32 to vector<8x128xf32>
    %20 = arith.addf %18, %19 : vector<8x128xf32>
    %21 = arith.addf %9, %20 : vector<8x128xf32>
    %22 = arith.select %11, %21, %9 : vector<8x128xi1>, vector<8x128xf32>
    %c0_8 = arith.constant 0 : index
    %c0_9 = arith.constant 0 : index
    %23 = vector.load %arg7[%c0_8, %c0_9] : memref<8x128xf32, #tpu.memory_space<vmem>>, vector<8x128xf32>
    %24 = vector.shape_cast %22 : vector<8x128xf32> to vector<1x8x128xf32>
    %cst_10 = arith.constant dense<0.000000e+00> : vector<8x128xf32>
    %25 = vector.multi_reduction <add>, %24, %cst_10 [0] : vector<1x8x128xf32> to vector<8x128xf32>
    %26 = arith.addf %23, %25 : vector<8x128xf32>
    %c0_11 = arith.constant 0 : index
    %c0_12 = arith.constant 0 : index
    %27 = vector.load %arg7[%c0_11, %c0_12] : memref<8x128xf32, #tpu.memory_space<vmem>>, vector<8x128xf32>
    tpu.vector_store %arg7[%c0_11, %c0_12], %26 {strides = array<i32>} : memref<8x128xf32, #tpu.memory_space<vmem>>, vector<8x128xf32>,
    %c0_i32_13 = arith.constant 0 : i32
    %28 = arith.cmpi eq, %arg1, %c0_i32_13 : i32
    %29 = arith.extui %28 : i1 to i32
    %c0_i32_14 = arith.constant 0 : i32
    %30 = arith.cmpi ne, %29, %c0_i32_14 : i32
    scf.if %30 {
      %c0_15 = arith.constant 0 : index
      %c0_16 = arith.constant 0 : index
      %31 = vector.load %arg7[%c0_15, %c0_16] : memref<8x128xf32, #tpu.memory_space<vmem>>, vector<8x128xf32>
      %32 = vector.shape_cast %31 : vector<8x128xf32> to vector<1x8x128xf32>
      %cst_17 = arith.constant dense<0.000000e+00> : vector<1xf32>
      %33 = vector.multi_reduction <add>, %32, %cst_17 [1, 2] : vector<1x8x128xf32> to vector<1xf32>
      %34 = vector.shape_cast %33 : vector<1xf32> to vector<1x1x1xf32>
      %35 = vector.extract %34[0, 0, 0] : f32 from vector<1x1x1xf32>
      %cst_18 = arith.constant 0.001953125 : f32
      %36 = arith.mulf %cst_18, %35 : f32
      %c0_19 = arith.constant 0 : index
      %c0_20 = arith.constant 0 : index
      %37 = vector.load %arg4[%c0_19, %c0_20] : memref<1x128xf32, #tpu.memory_space<vmem>>, vector<1x128xf32>
      %c0_21 = arith.constant 0 : index
      %c0_22 = arith.constant 0 : index
      %38 = vector.load %arg5[%c0_21, %c0_22] : memref<1x128xf32, #tpu.memory_space<vmem>>, vector<1x128xf32>
      %39 = arith.subf %37, %38 : vector<1x128xf32>
      %40 = arith.mulf %39, %39 : vector<1x128xf32>
      %41 = vector.shape_cast %40 : vector<1x128xf32> to vector<1x1x128xf32>
      %cst_23 = arith.constant dense<0.000000e+00> : vector<1xf32>
      %42 = vector.multi_reduction <add>, %41, %cst_23 [1, 2] : vector<1x1x128xf32> to vector<1xf32>
      %43 = vector.shape_cast %42 : vector<1xf32> to vector<1x1x1xf32>
      %44 = vector.extract %43[0, 0, 0] : f32 from vector<1x1x1xf32>
      %cst_24 = arith.constant 1.562500e-02 : f32
      %45 = arith.mulf %cst_24, %44 : f32
      %c0_i32_25 = arith.constant 0 : i32
      %46 = arith.cmpi eq, %arg0, %c0_i32_25 : i32
      %cst_26 = arith.constant 0.000000e+00 : f32
      %47 = arith.select %46, %45, %cst_26 : f32
      %48 = arith.addf %36, %47 : f32
      %49 = vector.broadcast %48 : f32 to vector<1x128xf32>
      %c0_27 = arith.constant 0 : index
      %c0_28 = arith.constant 0 : index
      %50 = vector.load %arg6[%c0_27, %c0_28] : memref<1x128xf32, #tpu.memory_space<vmem>>, vector<1x128xf32>
      tpu.vector_store %arg6[%c0_27, %c0_28], %49 {strides = array<i32>} : memref<1x128xf32, #tpu.memory_space<vmem>>, vector<1x128xf32>,
    } else {
    }
    return
  }
  func.func @transform_0(%arg0: i32, %arg1: i32) -> (i32, i32) {
    %c1_i32 = arith.constant 1 : i32
    %0 = arith.muli %arg0, %c1_i32 : i32
    %1 = arith.addi %0, %arg1 : i32
    %c0_i32 = arith.constant 0 : i32
    %c0_i32_0 = arith.constant 0 : i32
    return %1, %c0_i32 : i32, i32
  }
  func.func @transform_1(%arg0: i32, %arg1: i32) -> (i32, i32) {
    %c1_i32 = arith.constant 1 : i32
    %0 = arith.muli %arg0, %c1_i32 : i32
    %1 = arith.addi %0, %arg1 : i32
    %c0_i32 = arith.constant 0 : i32
    %c0_i32_0 = arith.constant 0 : i32
    return %1, %c0_i32 : i32, i32
  }
  func.func @transform_2(%arg0: i32, %arg1: i32) -> (i32, i32) {
    %c0_i32 = arith.constant 0 : i32
    %c0_i32_0 = arith.constant 0 : i32
    %c0_i32_1 = arith.constant 0 : i32
    return %c0_i32, %c0_i32_0 : i32, i32
  }
  func.func @transform_3(%arg0: i32, %arg1: i32) -> (i32, i32) {
    %c0_i32 = arith.constant 0 : i32
    %c0_i32_0 = arith.constant 0 : i32
    %c0_i32_1 = arith.constant 0 : i32
    return %c0_i32, %c0_i32_0 : i32, i32
  }
  func.func @transform_4(%arg0: i32, %arg1: i32) -> (i32, i32) {
    %c0_i32 = arith.constant 0 : i32
    %c0_i32_0 = arith.constant 0 : i32
    return %c0_i32, %arg0 : i32, i32
  }
}

</mosaic_0001>

<llo_original>
// kernel: tpu_custom_call.1
$region0: #{tpu_custom_call.1}
  #allocation0 [shape = 'u32[]', space=smem, size = 0x4, offset = 0x4, fixed_abs, tag = 'smem constant byte address 0x4 - core index']
  #allocation1 [shape = 'u32[144,128]{1,0:T(1,128)}', space=vmem, size = 0x12000, scoped, tag = 'internal scratch']
  #allocation2 [shape = 'f32[8,128]{1,0:T(8,128)}', space=vmem, size = 0x1000, scoped, tag = 'scratch operand']
  %s0 = inlined_call_operand.hbm [shape: f32[8,128], index: 0, kind: input, shape index: {}]
  %s1 = inlined_call_operand.hbm [shape: f32[8,128], index: 1, kind: input, shape index: {}]
  %s2 = inlined_call_operand.vmem [shape: f32[1,128], index: 2, kind: input, shape index: {}]
  %s3 = inlined_call_operand.vmem [shape: f32[1,128], index: 3, kind: input, shape index: {}]
  %s4 = inlined_call_operand.hbm [shape: f32[1,128], index: 4, kind: output, shape index: {}]
  %s5 = sld [smem:[#allocation0]]
  $region42: #{tpu_custom_call.1} parent=0
    _
  %s7 = ssub.s32 1, %s5
  %s8 = scalar_select 0, %s7, %s5
  $region1: #{tpu_custom_call.1} parent=0
    #allocation3 [shape = 'u8[4096]{0}', space=vmem, size = 0x1000, scoped, tag = 'input window, operand 0, single buffered']
    #allocation4 [shape = 's32[1]{0}', space=sflag, size = 0x4, scoped, tag = 'scoped memory for tpu_custom_call.1']
    #allocation5 [shape = 's32[1]{0}', space=sflag, size = 0x4, scoped, tag = 'scoped memory for tpu_custom_call.1']
    #allocation6 [shape = 'u8[4096]{0}', space=vmem, size = 0x1000, scoped, tag = 'input window, operand 1, single buffered']
    #allocation7 [shape = 's32[1]{0}', space=sflag, size = 0x4, scoped, tag = 'scoped memory for tpu_custom_call.1']
    #allocation8 [shape = 'u8[512]{0}', space=vmem, size = 0x400, scoped, tag = 'output window, operand 0, single buffered']
    %9 = vsyncpa [#allocation4], 0
    %10 = vsyncpa [#allocation7], 0
    %11 = vsyncpa [#allocation5], 0
    // Predicated region
    $region2: #{tpu_custom_call.1} parent=1 // pred_check
      _
    $region3: #{tpu_custom_call.1} parent=1 // pred_check_branch
      %13 = sbr.rel (0) target = $region5
    $region4: #{tpu_custom_call.1} parent=1 // pred_region
      %s14 = sadd.s32 0, 0
      %s16 = ssub.s32 128, 128
      %17 = vsyncadd [#allocation4], %s16
      %s18 = smul.addr %s14, 128
      %s19 = scalar_lea.hbm %s0, %s18
      %s21 = sshll.u32 [#allocation3], 4
      %s22 = int_to_ptr.vmem [resolvable:$true] %s21
      %24 = dma.hbm_to_vmem [thread:$0]  %s19, 128, %s22, [#allocation4]
    $region5: #{tpu_custom_call.1} parent=1 // pred_fallthru
      _
    // Predicated region
    $region6: #{tpu_custom_call.1} parent=1 // pred_check
      _
    $region7: #{tpu_custom_call.1} parent=1 // pred_check_branch
      %26 = sbr.rel (0) target = $region9
    $region8: #{tpu_custom_call.1} parent=1 // pred_region
      %s27 = sadd.s32 0, 0
      %s29 = ssub.s32 128, 128
      %30 = vsyncadd [#allocation7], %s29
      %s31 = smul.addr %s27, 128
      %s32 = scalar_lea.hbm %s1, %s31
      %s34 = sshll.u32 [#allocation6], 4
      %s35 = int_to_ptr.vmem [resolvable:$true] %s34
      %37 = dma.hbm_to_vmem [thread:$0]  %s32, 128, %s35, [#allocation7]
    $region9: #{tpu_custom_call.1} parent=1 // pred_fallthru
      _
    // Predicated region
    $region10: #{tpu_custom_call.1} parent=1 // pred_check
      _
    $region11: #{tpu_custom_call.1} parent=1 // pred_check_branch
      %39 = sbr.rel (0) target = $region13
    $region12: #{tpu_custom_call.1} parent=1 // pred_region
      _
    $region13: #{tpu_custom_call.1} parent=1 // pred_fallthru
      _
    // Predicated region
    $region14: #{tpu_custom_call.1} parent=1 // pred_check
      _
    $region15: #{tpu_custom_call.1} parent=1 // pred_check_branch
      %41 = sbr.rel (0) target = $region17
    $region16: #{tpu_custom_call.1} parent=1 // pred_region
      _
    $region17: #{tpu_custom_call.1} parent=1 // pred_fallthru
      _
    // Predicated region
    $region18: #{tpu_custom_call.1} parent=1 // pred_check
      _
    $region19: #{tpu_custom_call.1} parent=1 // pred_check_branch
      %43 = sbr.rel (0) target = $region21
    $region20: #{tpu_custom_call.1} parent=1 // pred_region
      %44 = dma.done [#allocation4], 128
    $region21: #{tpu_custom_call.1} parent=1 // pred_fallthru
      _
    // Predicated region
    $region22: #{tpu_custom_call.1} parent=1 // pred_check
      _
    $region23: #{tpu_custom_call.1} parent=1 // pred_check_branch
      %46 = sbr.rel (0) target = $region25
    $region24: #{tpu_custom_call.1} parent=1 // pred_region
      %47 = dma.done [#allocation7], 128
    $region25: #{tpu_custom_call.1} parent=1 // pred_fallthru
      _
    %s48 = sadd.s32 0, 0
    %s49 = sadd.s32 0, 0
    %p50 = scmp.eq.s32.totalorder 0, 0
    // Predicated region
    $region26: #{tpu_custom_call.1} parent=1 // pred_check
      %p51 = pneg %p50
    $region27: #{tpu_custom_call.1} parent=1 // pred_check_branch
      %53 = sbr.rel (%p51) target = $region29
    $region28: #{tpu_custom_call.1} parent=1 // pred_region
      %54 = vst [vmem:[#allocation2] sm:$0xff] 0.0
    $region29: #{tpu_custom_call.1} parent=1 // pred_fallthru
      _
    %v55 = vld [vmem:[#allocation3] sm:$0xff]
    %v56 = vld [vmem:[#allocation6] sm:$0xff]
    %v57 = vadd.f32 %v55, 1e-08
    %v58 = vlog2.pop %v57
    %v59 = vmul.f32 %v58, 0.6931472
    %v60 = vmul.f32 %v56, %v59
    %v61 = vsub.f32 %v55, %v60
    %vm62 = vcmp.gt.f32.partialorder %v56, 1.0
    %v63 = vsel %vm62, %v56, 1.0
    %v64 = vlog2.pop %v63
    %v65 = vmul.f32 %v64, 0.6931472
    %v66 = vadd.f32 %v63, 0.5
    %v67 = vmul.f32 %v66, %v65
    %v68 = vsub.f32 %v67, %v63
    %v69 = vadd.f32 %v68, 0.9189385
    %v70 = vadd.f32 %v61, %v69
    %v71 = vsel %vm62, %v70, %v61
    %v72 = vld [vmem:[#allocation2] sm:$0xff]
    %v73 = vadd.f32 %v71, 0.0
    %v74 = vadd.f32 %v72, %v73
    %75 = vst [vmem:[#allocation2] sm:$0xff] %v74
    // Predicated region
    $region30: #{tpu_custom_call.1} parent=1 // pred_check
      %p76 = pneg %p50
    $region31: #{tpu_custom_call.1} parent=1 // pred_check_branch
      %78 = sbr.rel (%p76) target = $region33
    $region32: #{tpu_custom_call.1} parent=1 // pred_region
      %v79 = vld [vmem:[#allocation2] sm:$0xff]
      %80 = vadd.xlane.f32.xlu0 %v79
      %v81 = vpop.xlane.xlu0 %80
      %v82 = vrot.slane %v81, 4
      %v83 = vadd.f32 %v81, %v82
      %v84 = vrot.slane %v83, 2
      %v85 = vadd.f32 %v83, %v84
      %v86 = vrot.slane %v85, 1
      %v87 = vadd.f32 %v85, %v86
      %s88 = vtos %v87
      %s89 = smul.f32 %s88, 0.001953125
      %v90 = vld [vmem:[%s2] sm:$0x1]
      %v91 = vld [vmem:[%s3] sm:$0x1]
      %v92 = vsub.f32 %v90, %v91
      %v93 = vmul.f32 %v92, %v92
      %vm94 = vcmask 1040384
      %v95 = vsel %vm94, %v93, 0.0
      %96 = vadd.xlane.f32.xlu0 %v95
      %v97 = vpop.xlane.xlu0 %96
      %v98 = vrot.slane %v97, 4
      %v99 = vadd.f32 %v97, %v98
      %v100 = vrot.slane %v99, 2
      %v101 = vadd.f32 %v99, %v100
      %v102 = vrot.slane %v101, 1
      %v103 = vadd.f32 %v101, %v102
      %s104 = vtos %v103
      %s105 = smul.f32 %s104, 0.015625
      %p106 = scmp.eq.s32.totalorder 0, 0
      %s107 = scalar_select %p106, %s105, 0.0
      %s108 = sadd.f32 %s89, %s107
      %v109 = vstv %s108
      %110 = vst [vmem:[#allocation8] sm:$0x1] %v109
    $region33: #{tpu_custom_call.1} parent=1 // pred_fallthru
      _
    // Predicated region
    $region34: #{tpu_custom_call.1} parent=1 // pred_check
      _
    $region35: #{tpu_custom_call.1} parent=1 // pred_check_branch
      %112 = sbr.rel (0) target = $region37
    $region36: #{tpu_custom_call.1} parent=1 // pred_region
      %s114 = ssub.s32 16, 16
      %115 = vsyncadd [#allocation5], %s114
      %s117 = sshll.u32 [#allocation8], 4
      %s118 = int_to_ptr.vmem [resolvable:$true] %s117
      %120 = dma.vmem_to_hbm [thread:$0]  %s118, 16, %s4, [#allocation5]
    $region37: #{tpu_custom_call.1} parent=1 // pred_fallthru
      _
    // Predicated region
    $region38: #{tpu_custom_call.1} parent=1 // pred_check
      _
    $region39: #{tpu_custom_call.1} parent=1 // pred_check_branch
      %122 = sbr.rel (0) target = $region41
    $region40: #{tpu_custom_call.1} parent=1 // pred_region
      %123 = dma.done [#allocation5], 16
    $region41: #{tpu_custom_call.1} parent=1 // pred_fallthru
      _
    %124 = vsyncpa [#allocation4], 1
    %125 = vsyncpa [#allocation7], 1
    %126 = vsyncpa [#allocation5], 1

</llo_original>
